<compile_context>
chip_gen: v7x
topology: tpu7x:2x2x1
jax: 0.10.0
libtpu: 0.0.40
codegen_flags: <defaults>
</compile_context>

<pallas_src>
import functools
import math

import jax
import jax.numpy as jnp
from jax import lax
from jax.experimental import pallas as pl
from jax.experimental.pallas import tpu as pltpu


_LANE = 128      # lane width (for reference)
_SUBLANE = 16    # M-tile alignment (covers fp32 (8,.) and bf16 (16,.) tiling)
_HID_CHUNK = 256 # hidden-dim chunk width (multiple of 128; MXU-native on v6e/v7x)


def _round_up(v, m):
    return (v + m - 1) // m * m


# --------------------------------------------------------------------------
# One-time, cached hardware / capability queries.
# --------------------------------------------------------------------------
@functools.lru_cache(maxsize=None)
def _vmem_capacity_bytes():
    try:
        info = pltpu.get_tpu_info()
        cap = getattr(info, "vmem_capacity_bytes", None)
        if cap:
            return int(cap)
    except Exception:
        pass
    return 64 << 20  # conservative default (v7x per-TC VMEM)


def _vmem_limit_bytes():
    # ~80% of physical VMEM: ~100 MiB on v5e/v6e, ~51 MiB on v7x.
    return int(_vmem_capacity_bytes() * 0.8)


@functools.lru_cache(maxsize=None)
def _single_buffer_supported():
    """Probe (once) whether pl.Buffered(1) resident operands are accepted.

    Uses a tiny standalone kernel so a failure here can never mask a real
    failure of the MLP kernel.
    """
    if not hasattr(pl, "Buffered"):
        return False
    try:
        def k(x_ref, w_ref, o_ref):
            o_ref[...] = x_ref[...] + w_ref[...]

        x = jnp.zeros((16, 128), jnp.float32)
        w = jnp.zeros((16, 128), jnp.float32)
        f = pl.pallas_call(
            k,
            out_shape=jax.ShapeDtypeStruct((16, 128), jnp.float32),
            grid=(1,),
            in_specs=[
                pl.BlockSpec((16, 128), lambda i: (0, 0)),
                pl.BlockSpec((16, 128), lambda i: (0, 0),
                             pipeline_mode=pl.Buffered(1)),
            ],
            out_specs=pl.BlockSpec((16, 128), lambda i: (0, 0)),
        )
        jax.block_until_ready(f(x, w))
        return True
    except Exception:
        # TODO(synk): on v7x, a guaranteed single weight copy could instead be
        # done by DMA-ing weights into VMEM scratch once under pl.when(step==0).
        return False


# --------------------------------------------------------------------------
# Kernels
# --------------------------------------------------------------------------
def _gelu(h, approximate):
    if approximate:
        # tanh approximation -> EUP slot (useful on v5e where exact erf
        # saturates the VALU); opt-in because nn.GELU default is exact erf.
        return jax.nn.gelu(h, approximate=True)
    inv_sqrt2 = jnp.float32(1.0 / math.sqrt(2.0))
    return 0.5 * h * (1.0 + lax.erf(h * inv_sqrt2))


def _mlp_kernel(x_ref, w1_ref, b1_ref, w2_ref, b2_ref, o_ref, *, approximate_gelu):
    # x_ref: (tm, in_f)  w1_ref: (in_f, hid_f)  b1_ref: (1, hid_f)
    # w2_ref: (hid_f, out_f)  b2_ref: (1, out_f)  o_ref: (tm, out_f)
    x = x_ref[...]
    h = jnp.dot(x, w1_ref[...], preferred_element_type=jnp.float32)
    h = h + b1_ref[...].astype(jnp.float32)
    h = _gelu(h, approximate_gelu)
    # dropout(p=0.0) -> identity
    y = jnp.dot(h.astype(x.dtype), w2_ref[...], preferred_element_type=jnp.float32)
    y = y + b2_ref[...].astype(jnp.float32)
    o_ref[...] = y.astype(o_ref.dtype)


def _mlp_kernel_chunked(x_ref, w1_ref, b1_ref, w2_ref, b2_ref, o_ref, *,
                        approximate_gelu, chunk, n_chunks):
    # Flash-MLP style: per 256-wide hidden slice, fc1 -> GELU -> fc2-accumulate.
    # Keeps the live fp32 intermediate at (tm, chunk) instead of (tm, hid_f).
    x = x_ref[...]

    def body(c, acc):
        off = pl.multiple_of(c * chunk, chunk)
        h = jnp.dot(x, w1_ref[:, pl.ds(off, chunk)],
                    preferred_element_type=jnp.float32)
        h = h + b1_ref[:, pl.ds(off, chunk)].astype(jnp.float32)
        h = _gelu(h, approximate_gelu)
        return acc + jnp.dot(h.astype(x.dtype), w2_ref[pl.ds(off, chunk), :],
                             preferred_element_type=jnp.float32)

    acc0 = jnp.zeros((x_ref.shape[0], o_ref.shape[1]), jnp.float32)
    acc = lax.fori_loop(0, n_chunks, body, acc0, unroll=True)
    acc = acc + b2_ref[...].astype(jnp.float32)
    o_ref[...] = acc.astype(o_ref.dtype)


# --------------------------------------------------------------------------
# pallas_call wrapper
# --------------------------------------------------------------------------
@functools.partial(
    jax.jit,
    static_argnames=("tm", "chunk", "approximate_gelu", "single_buffer", "vmem_limit"),
)
def _mlp_pallas_impl(x, w1, b1, w2, b2, *, tm, chunk, approximate_gelu,
                     single_buffer, vmem_limit):
    orig_shape = x.shape
    in_f, hid_f = w1.shape
    out_f = w2.shape[1]

    x2d = x.reshape(-1, in_f)
    m = x2d.shape[0]
    b1_2d = b1.reshape(1, hid_f)
    b2_2d = b2.reshape(1, out_f)

    grid = (pl.cdiv(m, tm),)  # ragged last tile: OOB rows are dropped on store

    def resident_spec(shape):
        # Constant index_map: the block never changes across the grid, so it
        # does not need double-buffering (matters most on v7x's 64 MiB VMEM).
        if single_buffer:
            return pl.BlockSpec(shape, lambda i: (0, 0),
                                pipeline_mode=pl.Buffered(1))
        return pl.BlockSpec(shape, lambda i: (0, 0))

    if chunk is not None:
        kernel = functools.partial(_mlp_kernel_chunked,
                                   approximate_gelu=approximate_gelu,
                                   chunk=chunk, n_chunks=hid_f // chunk)
    else:
        kernel = functools.partial(_mlp_kernel, approximate_gelu=approximate_gelu)

    out = pl.pallas_call(
        kernel,
        out_shape=jax.ShapeDtypeStruct((m, out_f), x.dtype),
        grid_spec=pltpu.PrefetchScalarGridSpec(
            num_scalar_prefetch=0,
            grid=grid,
            in_specs=[
                pl.BlockSpec((tm, in_f), lambda i: (i, 0)),  # x tile (pipelined)
                resident_spec((in_f, hid_f)),                 # w1 (resident)
                resident_spec((1, hid_f)),                    # b1
                resident_spec((hid_f, out_f)),                # w2 (resident)
                resident_spec((1, out_f)),                    # b2
            ],
            out_specs=pl.BlockSpec((tm, out_f), lambda i: (i, 0)),
        ),
        compiler_params=pltpu.CompilerParams(
            dimension_semantics=("parallel",),
            vmem_limit_bytes=vmem_limit,
        ),
    )(x2d, w1, b1_2d, w2, b2_2d)

    return out.reshape(*orig_shape[:-1], out_f)


def mlp_pallas(x, w1, b1, w2, b2, *, tile_m=None, approximate_gelu=False,
               hidden_chunk=None):
    """x: (..., in_features) -> (..., out_features). Weights stored as (in, out)."""
    in_f = x.shape[-1]
    hid_f = w1.shape[1]
    m = 1
    for d in x.shape[:-1]:
        m *= d

    # --- M tile -------------------------------------------------------------
    if tile_m is None:
        # Bigger tiles on 128-MiB parts (v5e/v6e), 256 on v7x (64 MiB / TC).
        tile_m = 512 if _vmem_capacity_bytes() >= (96 << 20) else 256
    # Ensure >= 2 grid steps whenever the token count allows (fills both
    # TensorCores on v7x via the "parallel" M axis; harmless elsewhere).
    tm = min(tile_m, _round_up(pl.cdiv(m, 2), _SUBLANE))
    tm = max(_SUBLANE, (tm // _SUBLANE) * _SUBLANE)

    # --- hidden-dim chunking (flash-MLP) --------------------------------------
    if hidden_chunk is None:
        chunk = _HID_CHUNK if (hid_f % _HID_CHUNK == 0 and hid_f >= 2 * _HID_CHUNK) else None
    else:
        chunk = hidden_chunk if (hid_f % hidden_chunk == 0
                                 and hid_f // hidden_chunk >= 2) else None

    assert in_f == w1.shape[0]
    return _mlp_pallas_impl(
        x, w1, b1, w2, b2,
        tm=tm, chunk=chunk, approximate_gelu=approximate_gelu,
        single_buffer=_single_buffer_supported(),
        vmem_limit=_vmem_limit_bytes(),
    )


# --------------------------------------------------------------------------
# Params / reference
# --------------------------------------------------------------------------
def init_mlp_params(key, in_features, hidden_features, out_features, dtype=jnp.float32):
    """Deterministic init mimicking nn.Linear default (uniform +/- 1/sqrt(fan_in)).
    Weights stored transposed relative to PyTorch, i.e. (in, out)."""
    k1, k2, k3, k4 = jax.random.split(key, 4)
    bound1 = 1.0 / math.sqrt(in_features)
    bound2 = 1.0 / math.sqrt(hidden_features)
    w1 = jax.random.uniform(k1, (in_features, hidden_features), dtype,
                            minval=-bound1, maxval=bound1)
    b1 = jax.random.uniform(k2, (hidden_features,), dtype,
                            minval=-bound1, maxval=bound1)
    w2 = jax.random.uniform(k3, (hidden_features, out_features), dtype,
                            minval=-bound2, maxval=bound2)
    b2 = jax.random.uniform(k4, (out_features,), dtype,
                            minval=-bound2, maxval=bound2)
    return w1, b1, w2, b2


def mlp_reference(x, w1, b1, w2, b2):
    h = x @ w1 + b1
    h = 0.5 * h * (1.0 + lax.erf(h / jnp.sqrt(2.0)))
    return h @ w2 + b2


if __name__ == "__main__":
    # Small shapes consistent with Mlp applied to (B, N, C) token tensors.
    B, N = 2, 64
    in_features = 32
    hidden_features = 64
    out_features = in_features

    key = jax.random.PRNGKey(0)
    kx, kp = jax.random.split(key)
    x = jax.random.normal(kx, (B, N, in_features), dtype=jnp.float32)
    w1, b1, w2, b2 = init_mlp_params(kp, in_features, hidden_features, out_features)

    y = jax.block_until_ready(mlp_pallas(x, w1, b1, w2, b2))
    y_ref = mlp_reference(x.reshape(-1, in_features), w1, b1, w2, b2).reshape(y.shape)
    assert y.shape == (B, N, out_features)
    assert jnp.allclose(y, y_ref, atol=1e-5, rtol=1e-5), "mismatch vs reference"

    # Also exercise the hidden-chunk (flash-MLP) path with a wider hidden dim.
    hid_wide = 512
    w1w, b1w, w2w, b2w = init_mlp_params(jax.random.PRNGKey(1),
                                         in_features, hid_wide, out_features)
    y2 = jax.block_until_ready(mlp_pallas(x, w1w, b1w, w2w, b2w))
    y2_ref = mlp_reference(x.reshape(-1, in_features), w1w, b1w, w2w, b2w).reshape(y2.shape)
    assert jnp.allclose(y2, y2_ref, atol=1e-4, rtol=1e-4), "chunked-path mismatch"

    print("KERNEL_OK")
</pallas_src>

<mosaic_0001>
module attributes {stable_mosaic.version = 11 : i64} {
  func.func @k(%arg0: i32, %arg1: memref<16x128xf32, #tpu.memory_space<vmem>>, %arg2: memref<16x128xf32, #tpu.memory_space<vmem>>, %arg3: memref<16x128xf32, #tpu.memory_space<vmem>>) attributes {dimension_semantics = [#tpu.dimension_semantics<arbitrary>], iteration_bounds = array<i64: 1>, scalar_prefetch = 0 : i64, scratch_operands = 0 : i64, tpu.core_type = #tpu.core_type<tc>, window_params = [{pipeline_mode = #tpu.pipeline_mode<synchronous>, transform_indices = @transform_0, window_bounds = array<i64: 16, 128>}, {pipeline_mode = #tpu.pipeline_mode<synchronous>, transform_indices = @transform_1, window_bounds = array<i64: 16, 128>}, {pipeline_mode = #tpu.pipeline_mode<synchronous>, transform_indices = @transform_2, window_bounds = array<i64: 16, 128>}]} {
    %c0 = arith.constant 0 : index
    %c0_0 = arith.constant 0 : index
    %0 = vector.load %arg1[%c0, %c0_0] : memref<16x128xf32, #tpu.memory_space<vmem>>, vector<16x128xf32>
    %c0_1 = arith.constant 0 : index
    %c0_2 = arith.constant 0 : index
    %1 = vector.load %arg2[%c0_1, %c0_2] : memref<16x128xf32, #tpu.memory_space<vmem>>, vector<16x128xf32>
    %2 = arith.addf %0, %1 : vector<16x128xf32>
    %c0_3 = arith.constant 0 : index
    %c0_4 = arith.constant 0 : index
    %3 = vector.load %arg3[%c0_3, %c0_4] : memref<16x128xf32, #tpu.memory_space<vmem>>, vector<16x128xf32>
    tpu.vector_store %arg3[%c0_3, %c0_4], %2 {strides = array<i32>} : memref<16x128xf32, #tpu.memory_space<vmem>>, vector<16x128xf32>,
    return
  }
  func.func @transform_0(%arg0: i32) -> (i32, i32) {
    %c0_i32 = arith.constant 0 : i32
    %c0_i32_0 = arith.constant 0 : i32
    %c0_i32_1 = arith.constant 0 : i32
    return %c0_i32, %c0_i32_0 : i32, i32
  }
  func.func @transform_1(%arg0: i32) -> (i32, i32) {
    %c0_i32 = arith.constant 0 : i32
    %c0_i32_0 = arith.constant 0 : i32
    %c0_i32_1 = arith.constant 0 : i32
    return %c0_i32, %c0_i32_0 : i32, i32
  }
  func.func @transform_2(%arg0: i32) -> (i32, i32) {
    %c0_i32 = arith.constant 0 : i32
    %c0_i32_0 = arith.constant 0 : i32
    %c0_i32_1 = arith.constant 0 : i32
    return %c0_i32, %c0_i32_0 : i32, i32
  }
}

module attributes {stable_mosaic.version = 11 : i64} {
  func.func @_mlp_kernel(%arg0: i32, %arg1: memref<64x32xf32, #tpu.memory_space<vmem>>, %arg2: memref<32x64xf32, #tpu.memory_space<vmem>>, %arg3: memref<1x64xf32, #tpu.memory_space<vmem>>, %arg4: memref<64x32xf32, #tpu.memory_space<vmem>>, %arg5: memref<1x32xf32, #tpu.memory_space<vmem>>, %arg6: memref<64x32xf32, #tpu.memory_space<vmem>>) attributes {dimension_semantics = [#tpu.dimension_semantics<parallel>], iteration_bounds = array<i64: 2>, scalar_prefetch = 0 : i64, scratch_operands = 0 : i64, tpu.core_type = #tpu.core_type<tc>, window_params = [{transform_indices = @transform_0, window_bounds = array<i64: 64, 32>}, {pipeline_mode = #tpu.pipeline_mode<synchronous>, transform_indices = @transform_1, window_bounds = array<i64: 32, 64>}, {pipeline_mode = #tpu.pipeline_mode<synchronous>, transform_indices = @transform_2, window_bounds = array<i64: 1, 64>}, {pipeline_mode = #tpu.pipeline_mode<synchronous>, transform_indices = @transform_3, window_bounds = array<i64: 64, 32>}, {pipeline_mode = #tpu.pipeline_mode<synchronous>, transform_indices = @transform_4, window_bounds = array<i64: 1, 32>}, {transform_indices = @transform_5, window_bounds = array<i64: 64, 32>}]} {
    %c0 = arith.constant 0 : index
    %c0_0 = arith.constant 0 : index
    %0 = vector.load %arg1[%c0, %c0_0] : memref<64x32xf32, #tpu.memory_space<vmem>>, vector<64x32xf32>
    %c0_1 = arith.constant 0 : index
    %c0_2 = arith.constant 0 : index
    %1 = vector.load %arg2[%c0_1, %c0_2] : memref<32x64xf32, #tpu.memory_space<vmem>>, vector<32x64xf32>
    %cst = arith.constant dense<0.000000e+00> : vector<64x64xf32>
    %2 = tpu.matmul %0, %1, %cst {dimension_numbers = #tpu.dot_dimension_numbers<[1], [0], [0], [1], [0, 0, 1, 1], [], []>} : vector<64x32xf32>, vector<32x64xf32>, vector<64x64xf32> -> vector<64x64xf32>
    %c0_3 = arith.constant 0 : index
    %c0_4 = arith.constant 0 : index
    %3 = vector.load %arg3[%c0_3, %c0_4] : memref<1x64xf32, #tpu.memory_space<vmem>>, vector<1x64xf32>
    %4 = vector.broadcast %3 : vector<1x64xf32> to vector<64x64xf32>
    %5 = arith.addf %2, %4 : vector<64x64xf32>
    %cst_5 = arith.constant 5.000000e-01 : f32
    %6 = vector.broadcast %cst_5 : f32 to vector<64x64xf32>
    %7 = arith.mulf %6, %5 : vector<64x64xf32>
    %cst_6 = arith.constant 0.707106769 : f32
    %8 = vector.broadcast %cst_6 : f32 to vector<64x64xf32>
    %9 = arith.mulf %5, %8 : vector<64x64xf32>
    %10 = math.erf %9 : vector<64x64xf32>
    %cst_7 = arith.constant 1.000000e+00 : f32
    %11 = vector.broadcast %cst_7 : f32 to vector<64x64xf32>
    %12 = arith.addf %11, %10 : vector<64x64xf32>
    %13 = arith.mulf %7, %12 : vector<64x64xf32>
    %c0_8 = arith.constant 0 : index
    %c0_9 = arith.constant 0 : index
    %14 = vector.load %arg4[%c0_8, %c0_9] : memref<64x32xf32, #tpu.memory_space<vmem>>, vector<64x32xf32>
    %cst_10 = arith.constant dense<0.000000e+00> : vector<64x32xf32>
    %15 = tpu.matmul %13, %14, %cst_10 {dimension_numbers = #tpu.dot_dimension_numbers<[1], [0], [0], [1], [0, 0, 1, 1], [], []>} : vector<64x64xf32>, vector<64x32xf32>, vector<64x32xf32> -> vector<64x32xf32>
    %c0_11 = arith.constant 0 : index
    %c0_12 = arith.constant 0 : index
    %16 = vector.load %arg5[%c0_11, %c0_12] : memref<1x32xf32, #tpu.memory_space<vmem>>, vector<1x32xf32>
    %17 = vector.broadcast %16 : vector<1x32xf32> to vector<64x32xf32>
    %18 = arith.addf %15, %17 : vector<64x32xf32>
    %c0_13 = arith.constant 0 : index
    %c0_14 = arith.constant 0 : index
    %19 = vector.load %arg6[%c0_13, %c0_14] : memref<64x32xf32, #tpu.memory_space<vmem>>, vector<64x32xf32>
    tpu.vector_store %arg6[%c0_13, %c0_14], %18 {strides = array<i32>} : memref<64x32xf32, #tpu.memory_space<vmem>>, vector<64x32xf32>,
    return
  }
  func.func @transform_0(%arg0: i32) -> (i32, i32) {
    %c0_i32 = arith.constant 0 : i32
    %c0_i32_0 = arith.constant 0 : i32
    return %arg0, %c0_i32 : i32, i32
  }
  func.func @transform_1(%arg0: i32) -> (i32, i32) {
    %c0_i32 = arith.constant 0 : i32
    %c0_i32_0 = arith.constant 0 : i32
    %c0_i32_1 = arith.constant 0 : i32
    return %c0_i32, %c0_i32_0 : i32, i32
  }
  func.func @transform_2(%arg0: i32) -> (i32, i32) {
    %c0_i32 = arith.constant 0 : i32
    %c0_i32_0 = arith.constant 0 : i32
    %c0_i32_1 = arith.constant 0 : i32
    return %c0_i32, %c0_i32_0 : i32, i32
  }
  func.func @transform_3(%arg0: i32) -> (i32, i32) {
    %c0_i32 = arith.constant 0 : i32
    %c0_i32_0 = arith.constant 0 : i32
    %c0_i32_1 = arith.constant 0 : i32
    return %c0_i32, %c0_i32_0 : i32, i32
  }
  func.func @transform_4(%arg0: i32) -> (i32, i32) {
    %c0_i32 = arith.constant 0 : i32
    %c0_i32_0 = arith.constant 0 : i32
    %c0_i32_1 = arith.constant 0 : i32
    return %c0_i32, %c0_i32_0 : i32, i32
  }
  func.func @transform_5(%arg0: i32) -> (i32, i32) {
    %c0_i32 = arith.constant 0 : i32
    %c0_i32_0 = arith.constant 0 : i32
    return %arg0, %c0_i32 : i32, i32
  }
}

</mosaic_0001>

<llo_original>
// kernel: tpu_custom_call.1
$region0: #{tpu_custom_call.1}
  #allocation0 [shape = 'u32[]', space=smem, size = 0x4, offset = 0x4, fixed_abs, tag = 'smem constant byte address 0x4 - core index']
  #allocation1 [shape = 'u32[144,128]{1,0:T(1,128)}', space=vmem, size = 0x12000, scoped, tag = 'internal scratch']
  %s0 = inlined_call_operand.hbm [shape: f32[16,128], index: 0, kind: input, shape index: {}]
  %s1 = inlined_call_operand.hbm [shape: f32[16,128], index: 1, kind: input, shape index: {}]
  %s2 = inlined_call_operand.hbm [shape: f32[16,128], index: 2, kind: output, shape index: {}]
  %s3 = sld [smem:[#allocation0]]
  $region26: #{tpu_custom_call.1} parent=0
    _
  %s5 = ssub.s32 1, %s3
  %s6 = scalar_select 0, %s5, %s3
  $region1: #{tpu_custom_call.1} parent=0
    #allocation2 [shape = 'u8[8192]{0}', space=vmem, size = 0x2000, scoped, tag = 'input window, operand 0, single buffered']
    #allocation3 [shape = 's32[1]{0}', space=sflag, size = 0x4, scoped, tag = 'scoped memory for tpu_custom_call.1']
    #allocation4 [shape = 's32[1]{0}', space=sflag, size = 0x4, scoped, tag = 'scoped memory for tpu_custom_call.1']
    #allocation5 [shape = 'u8[8192]{0}', space=vmem, size = 0x2000, scoped, tag = 'input window, operand 1, single buffered']
    #allocation6 [shape = 's32[1]{0}', space=sflag, size = 0x4, scoped, tag = 'scoped memory for tpu_custom_call.1']
    #allocation7 [shape = 'u8[8192]{0}', space=vmem, size = 0x2000, scoped, tag = 'output window, operand 0, single buffered']
    %7 = vsyncpa [#allocation3], 0
    %8 = vsyncpa [#allocation6], 0
    %9 = vsyncpa [#allocation4], 0
    // Predicated region
    $region2: #{tpu_custom_call.1} parent=1 // pred_check
      _
    $region3: #{tpu_custom_call.1} parent=1 // pred_check_branch
      %11 = sbr.rel (0) target = $region5
    $region4: #{tpu_custom_call.1} parent=1 // pred_region
      %s13 = ssub.s32 256, 256
      %14 = vsyncadd [#allocation3], %s13
      %s15 = sshll.u32 [#allocation2], 4
      %s16 = int_to_ptr.vmem [resolvable:$true] %s15
      %21 = dma.hbm_to_vmem [thread:$0]  %s0, 256, %s16, [#allocation3], 128, 128, 8
    $region5: #{tpu_custom_call.1} parent=1 // pred_fallthru
      _
    // Predicated region
    $region6: #{tpu_custom_call.1} parent=1 // pred_check
      _
    $region7: #{tpu_custom_call.1} parent=1 // pred_check_branch
      %23 = sbr.rel (0) target = $region9
    $region8: #{tpu_custom_call.1} parent=1 // pred_region
      %s25 = ssub.s32 256, 256
      %26 = vsyncadd [#allocation6], %s25
      %s27 = sshll.u32 [#allocation5], 4
      %s28 = int_to_ptr.vmem [resolvable:$true] %s27
      %33 = dma.hbm_to_vmem [thread:$0]  %s1, 256, %s28, [#allocation6], 128, 128, 8
    $region9: #{tpu_custom_call.1} parent=1 // pred_fallthru
      _
    // Predicated region
    $region10: #{tpu_custom_call.1} parent=1 // pred_check
      _
    $region11: #{tpu_custom_call.1} parent=1 // pred_check_branch
      %35 = sbr.rel (0) target = $region13
    $region12: #{tpu_custom_call.1} parent=1 // pred_region
      %36 = dma.done [#allocation3], 256
    $region13: #{tpu_custom_call.1} parent=1 // pred_fallthru
      _
    // Predicated region
    $region14: #{tpu_custom_call.1} parent=1 // pred_check
      _
    $region15: #{tpu_custom_call.1} parent=1 // pred_check_branch
      %38 = sbr.rel (0) target = $region17
    $region16: #{tpu_custom_call.1} parent=1 // pred_region
      %39 = dma.done [#allocation6], 256
    $region17: #{tpu_custom_call.1} parent=1 // pred_fallthru
      _
    %v40 = vld [vmem:[#allocation2] sm:$0xff]
    %v41 = vld [vmem:[#allocation2 + $0x8] sm:$0xff]
    %v42 = vld [vmem:[#allocation5] sm:$0xff]
    %v43 = vld [vmem:[#allocation5 + $0x8] sm:$0xff]
    %v44 = vadd.f32 %v40, %v42
    %v45 = vadd.f32 %v41, %v43
    %46 = vst [vmem:[#allocation7] sm:$0xff] %v44
    %47 = vst [vmem:[#allocation7 + $0x8] sm:$0xff] %v45
    // Predicated region
    $region18: #{tpu_custom_call.1} parent=1 // pred_check
      _
    $region19: #{tpu_custom_call.1} parent=1 // pred_check_branch
      %49 = sbr.rel (0) target = $region21
    $region20: #{tpu_custom_call.1} parent=1 // pred_region
      %s51 = ssub.s32 256, 256
      %52 = vsyncadd [#allocation4], %s51
      %s53 = sshll.u32 [#allocation7], 4
      %s54 = int_to_ptr.vmem [resolvable:$true] %s53
      %59 = dma.vmem_to_hbm [thread:$0]  %s54, 256, %s2, [#allocation4], 128, 128, 8
    $region21: #{tpu_custom_call.1} parent=1 // pred_fallthru
      _
    // Predicated region
    $region22: #{tpu_custom_call.1} parent=1 // pred_check
      _
    $region23: #{tpu_custom_call.1} parent=1 // pred_check_branch
      %61 = sbr.rel (0) target = $region25
    $region24: #{tpu_custom_call.1} parent=1 // pred_region
      %62 = dma.done [#allocation4], 256
    $region25: #{tpu_custom_call.1} parent=1 // pred_fallthru
      _
    %63 = vsyncpa [#allocation3], 1
    %64 = vsyncpa [#allocation6], 1
    %65 = vsyncpa [#allocation4], 1

// kernel: _mlp_pallas_impl.1
$region0: #{_mlp_pallas_impl.1}
  #allocation0 [shape = 'u32[]', space=smem, size = 0x4, offset = 0x4, fixed_abs, tag = 'smem constant byte address 0x4 - core index']
  #allocation1 [shape = 'u32[144,128]{1,0:T(1,128)}', space=vmem, size = 0x12000, scoped, tag = 'internal scratch']
  %s0 = inlined_call_operand.vmem [shape: f32[128,32], index: 0, kind: input, shape index: {}]
  %s1 = inlined_call_operand.vmem [shape: f32[32,64], index: 1, kind: input, shape index: {}]
  %s2 = inlined_call_operand.vmem [shape: f32[1,64], index: 2, kind: input, shape index: {}]
  %s3 = inlined_call_operand.vmem [shape: f32[64,32], index: 3, kind: input, shape index: {}]
  %s4 = inlined_call_operand.vmem [shape: f32[1,32], index: 4, kind: input, shape index: {}]
  %s5 = inlined_call_operand.vmem [shape: f32[128,32], index: 5, kind: output, shape index: {}]
  %s6 = sld [smem:[#allocation0]]
  $region53: #{_mlp_pallas_impl.1} parent=0
    _
  %s8 = ssub.s32 1, %s6
  %s9 = scalar_select 0, %s8, %s6
  loop: start=0, step=1, limit=4
  $region2: #{_mlp_pallas_impl.1} parent=0 // loop_pre_header
    _
  $region3: #{_mlp_pallas_impl.1} parent=0 // loop_header
    %s11 = sphi 0, %s15
    %p12 = scmp.ge.s32.totalorder %s11, 4
    %s21 = sphi 0, %s23
    %s24 = sphi 0, %s21
    %s25 = sphi 0, %s24
    %s41 = sphi 0, %s25
    %s45 = sphi 0, %s45
    %s47 = sphi 0, %s45
    %s48 = sphi 0, %s47
    %s62 = sphi 0, %s48
    %s66 = sphi 0, %s66
    %s68 = sphi 0, %s66
    %s69 = sphi 0, %s68
    %s83 = sphi 0, %s69
    %s87 = sphi 0, %s87
    %s89 = sphi 0, %s87
    %s90 = sphi 0, %s89
    %s104 = sphi 0, %s90
    %s108 = sphi 0, %s108
    %s110 = sphi 0, %s108
    %s111 = sphi 0, %s110
    %s125 = sphi 0, %s111
    %s131 = sphi 0, %s133
    %s134 = sphi 0, %s131
    %s135 = sphi 0, %s134
    %s151 = sphi 0, %s135
  $region4: #{_mlp_pallas_impl.1} parent=0 // loop_header_branch
    %14 = sbr.rel (%p12) target = $region8
  $region5: #{_mlp_pallas_impl.1} parent=0 // loop_body
    %s16 = ssub.s32 %s11, 1
    %s17 = ssub.s32 %s11, 2
    %s18 = sadd.s32 %s11, 1
    %s19 = ssub.s32 %s11, %s18
    %p20 = scmp.eq.s32.totalorder %s19, 0
    %s22 = sadd.s32 %s21, 1
    %s23 = scalar_select %p20, %s21, %s22
    %p26 = pneg %p20
    %p27 = scmp.eq.s32.totalorder %s11, 1
    %p28 = por %p26, %p27
    %p29 = scmp.ne.s32.totalorder %s21, %s24
    %p30 = scmp.eq.s32.totalorder %s11, 0
    %p31 = por %p29, %p30
    %p32 = scmp.ne.s32.totalorder %s21, %s24
    %p33 = scmp.eq.s32.totalorder %s16, 1
    %p34 = por %p32, %p33
    %p35 = scmp.ne.s32.totalorder %s24, %s25
    %p36 = scmp.eq.s32.totalorder %s16, 0
    %p37 = por %p35, %p36
    %p38 = scmp.ne.s32.totalorder %s24, %s25
    %p39 = scmp.eq.s32.totalorder %s17, 1
    %p40 = por %p38, %p39
    %p42 = scmp.ne.s32.totalorder %s25, %s41
    %p43 = scmp.eq.s32.totalorder %s17, 0
    %p44 = por %p42, %p43
    %s46 = sadd.s32 %s45, 1
    %p49 = scmp.eq.s32.totalorder %s11, 1
    %p50 = scmp.ne.s32.totalorder %s45, %s47
    %p51 = scmp.eq.s32.totalorder %s11, 0
    %p52 = por %p50, %p51
    %p53 = scmp.ne.s32.totalorder %s45, %s47
    %p54 = scmp.eq.s32.totalorder %s16, 1
    %p55 = por %p53, %p54
    %p56 = scmp.ne.s32.totalorder %s47, %s48
    %p57 = scmp.eq.s32.totalorder %s16, 0
    %p58 = por %p56, %p57
    %p59 = scmp.ne.s32.totalorder %s47, %s48
    %p60 = scmp.eq.s32.totalorder %s17, 1
    %p61 = por %p59, %p60
    %p63 = scmp.ne.s32.totalorder %s48, %s62
    %p64 = scmp.eq.s32.totalorder %s17, 0
    %p65 = por %p63, %p64
    %s67 = sadd.s32 %s66, 1
    %p70 = scmp.eq.s32.totalorder %s11, 1
    %p71 = scmp.ne.s32.totalorder %s66, %s68
    %p72 = scmp.eq.s32.totalorder %s11, 0
    %p73 = por %p71, %p72
    %p74 = scmp.ne.s32.totalorder %s66, %s68
    %p75 = scmp.eq.s32.totalorder %s16, 1
    %p76 = por %p74, %p75
    %p77 = scmp.ne.s32.totalorder %s68, %s69
    %p78 = scmp.eq.s32.totalorder %s16, 0
    %p79 = por %p77, %p78
    %p80 = scmp.ne.s32.totalorder %s68, %s69
    %p81 = scmp.eq.s32.totalorder %s17, 1
    %p82 = por %p80, %p81
    %p84 = scmp.ne.s32.totalorder %s69, %s83
    %p85 = scmp.eq.s32.totalorder %s17, 0
    %p86 = por %p84, %p85
    %s88 = sadd.s32 %s87, 1
    %p91 = scmp.eq.s32.totalorder %s11, 1
    %p92 = scmp.ne.s32.totalorder %s87, %s89
    %p93 = scmp.eq.s32.totalorder %s11, 0
    %p94 = por %p92, %p93
    %p95 = scmp.ne.s32.totalorder %s87, %s89
    %p96 = scmp.eq.s32.totalorder %s16, 1
    %p97 = por %p95, %p96
    %p98 = scmp.ne.s32.totalorder %s89, %s90
    %p99 = scmp.eq.s32.totalorder %s16, 0
    %p100 = por %p98, %p99
    %p101 = scmp.ne.s32.totalorder %s89, %s90
    %p102 = scmp.eq.s32.totalorder %s17, 1
    %p103 = por %p101, %p102
    %p105 = scmp.ne.s32.totalorder %s90, %s104
    %p106 = scmp.eq.s32.totalorder %s17, 0
    %p107 = por %p105, %p106
    %s109 = sadd.s32 %s108, 1
    %p112 = scmp.eq.s32.totalorder %s11, 1
    %p113 = scmp.ne.s32.totalorder %s108, %s110
    %p114 = scmp.eq.s32.totalorder %s11, 0
    %p115 = por %p113, %p114
    %p116 = scmp.ne.s32.totalorder %s108, %s110
    %p117 = scmp.eq.s32.totalorder %s16, 1
    %p118 = por %p116, %p117
    %p119 = scmp.ne.s32.totalorder %s110, %s111
    %p120 = scmp.eq.s32.totalorder %s16, 0
    %p121 = por %p119, %p120
    %p122 = scmp.ne.s32.totalorder %s110, %s111
    %p123 = scmp.eq.s32.totalorder %s17, 1
    %p124 = por %p122, %p123
    %p126 = scmp.ne.s32.totalorder %s111, %s125
    %p127 = scmp.eq.s32.totalorder %s17, 0
    %p128 = por %p126, %p127
    %s129 = ssub.s32 %s11, %s18
    %p130 = scmp.eq.s32.totalorder %s129, 0
    %s132 = sadd.s32 %s131, 1
    %s133 = scalar_select %p130, %s131, %s132
    %p136 = pneg %p130
    %p137 = scmp.eq.s32.totalorder %s11, 1
    %p138 = por %p136, %p137
    %p139 = scmp.ne.s32.totalorder %s131, %s134
    %p140 = scmp.eq.s32.totalorder %s11, 0
    %p141 = por %p139, %p140
    %p142 = scmp.ne.s32.totalorder %s131, %s134
    %p143 = scmp.eq.s32.totalorder %s16, 1
    %p144 = por %p142, %p143
    %p145 = scmp.ne.s32.totalorder %s134, %s135
    %p146 = scmp.eq.s32.totalorder %s16, 0
    %p147 = por %p145, %p146
    %p148 = scmp.ne.s32.totalorder %s134, %s135
    %p149 = scmp.eq.s32.totalorder %s17, 1
    %p150 = por %p148, %p149
    %p152 = scmp.ne.s32.totalorder %s135, %s151
    %p153 = scmp.eq.s32.totalorder %s17, 0
    %p154 = por %p152, %p153
    %p155 = scmp.le.s32.totalorder 1, %s11
    %p156 = scmp.lt.s32.totalorder %s11, 3
    %p157 = pnand %p155, %p156
    %p158 = pneg %p157
    // Predicated region
    $region9: #{_mlp_pallas_impl.1} parent=5 // pred_check
      _
    $region10: #{_mlp_pallas_impl.1} parent=5 // pred_check_branch
      %160 = sbr.rel (%p157) target = $region12
    $region11: #{_mlp_pallas_impl.1} parent=5 // pred_region
      %s161 = ssub.s32 %s11, 1
      // Predicated region
      $region13: #{_mlp_pallas_impl.1} parent=11 // pred_check
        %p162 = pneg %p58
      $region14: #{_mlp_pallas_impl.1} parent=11 // pred_check_branch
        %164 = sbr.rel (%p162) target = $region16
      $region15: #{_mlp_pallas_impl.1} parent=11 // pred_region
        _
      $region16: #{_mlp_pallas_impl.1} parent=11 // pred_fallthru
        _
      // Predicated region
      $region17: #{_mlp_pallas_impl.1} parent=11 // pred_check
        %p165 = pneg %p79
      $region18: #{_mlp_pallas_impl.1} parent=11 // pred_check_branch
        %167 = sbr.rel (%p165) target = $region20
      $region19: #{_mlp_pallas_impl.1} parent=11 // pred_region
        _
      $region20: #{_mlp_pallas_impl.1} parent=11 // pred_fallthru
        _
      // Predicated region
      $region21: #{_mlp_pallas_impl.1} parent=11 // pred_check
        %p168 = pneg %p100
      $region22: #{_mlp_pallas_impl.1} parent=11 // pred_check_branch
        %170 = sbr.rel (%p168) target = $region24
      $region23: #{_mlp_pallas_impl.1} parent=11 // pred_region
        _
      $region24: #{_mlp_pallas_impl.1} parent=11 // pred_fallthru
        _
      // Predicated region
      $region25: #{_mlp_pallas_impl.1} parent=11 // pred_check
        %p171 = pneg %p121
      $region26: #{_mlp_pallas_impl.1} parent=11 // pred_check_branch
        %173 = sbr.rel (%p171) target = $region28
      $region27: #{_mlp_pallas_impl.1} parent=11 // pred_region
        _
      $region28: #{_mlp_pallas_impl.1} parent=11 // pred_fallthru
        _
    $region12: #{_mlp_pallas_impl.1} parent=5 // pred_fallthru
      _
    %p174 = scmp.lt.s32.totalorder %s11, 2
    // Predicated region
    $region29: #{_mlp_pallas_impl.1} parent=5 // pred_check
      %p175 = pneg %p174
    $region30: #{_mlp_pallas_impl.1} parent=5 // pred_check_branch
      %177 = sbr.rel (%p175) target = $region32
    $region31: #{_mlp_pallas_impl.1} parent=5 // pred_region
      // Predicated region
      $region33: #{_mlp_pallas_impl.1} parent=31 // pred_check
        %p178 = pneg %p31
      $region34: #{_mlp_pallas_impl.1} parent=31 // pred_check_branch
        %180 = sbr.rel (%p178) target = $region36
      $region35: #{_mlp_pallas_impl.1} parent=31 // pred_region
        %s181 = smul.u32 8, %s11
        %p182 = scmp.lt.s32.totalorder %s181, 15
        %s183 = scalar_select %p182, %s181, 15
        %s184 = smul.addr %s183, 8
        %s185 = scalar_lea.vmem %s0, %s184
        %s186 = smul.u32 8, %s11
      $region36: #{_mlp_pallas_impl.1} parent=31 // pred_fallthru
        _
    $region32: #{_mlp_pallas_impl.1} parent=5 // pred_fallthru
      _
    %p187 = scmp.le.s32.totalorder 1, %s11
    %p188 = scmp.lt.s32.totalorder %s11, 3
    %p189 = pnand %p187, %p188
    %p190 = pneg %p189
    // Predicated region
    $region37: #{_mlp_pallas_impl.1} parent=5 // pred_check
      _
    $region38: #{_mlp_pallas_impl.1} parent=5 // pred_check_branch
      %192 = sbr.rel (%p189) target = $region40
    $region39: #{_mlp_pallas_impl.1} parent=5 // pred_region
      %s193 = ssub.s32 %s11, 1
      %s194 = smul.u32 8, %s16
      %p195 = scmp.lt.s32.totalorder %s194, 15
      %s196 = scalar_select %p195, %s194, 15
      %s197 = smul.addr %s196, 8
      %s198 = scalar_lea.vmem %s0, %s197
      %p199 = pneg %p37
      %p200 = pneg %p34
      %p201 = pneg %p58
      %p202 = pneg %p55
      %p203 = pneg %p79
      %p204 = pneg %p76
      %p205 = pneg %p100
      %p206 = pneg %p97
      %p207 = pneg %p121
      %p208 = pneg %p118
      %p209 = pneg %p147
      %p210 = pneg %p144
      %s211 = smul.u32 8, %s16
      %p212 = scmp.lt.s32.totalorder %s211, 15
      %s213 = scalar_select %p212, %s211, 15
      %s214 = smul.addr %s213, 8
      %s215 = scalar_lea.vmem %s5, %s214
      %s216 = smul.u32 8, %s16
      %p217 = scmp.lt.s32.totalorder %s216, 15
      %s218 = scalar_select %p217, %s216, 15
      %s219 = smul.addr %s218, 8
      %s220 = scalar_lea.vmem %s0, %s219
      %s221 = smul.u32 8, %s16
      %s222 = smul.u32 8, %s16
      %p223 = scmp.lt.s32.totalorder %s222, 15
      %s224 = scalar_select %p223, %s222, 15
      %s225 = smul.addr %s224, 8
      %s226 = scalar_lea.vmem %s5, %s225
      %s227 = smul.u32 8, %s16
      %v228 = vld [vmem:[%s220] sm:$0xff]
      %v229 = vld [vmem:[%s220 + $0x8] sm:$0xff]
      %v230 = vld [vmem:[%s220 + $0x10] sm:$0xff]
      %v231 = vld [vmem:[%s220 + $0x18] sm:$0xff]
      %v232 = vld [vmem:[%s220 + $0x20] sm:$0xff]
      %v233 = vld [vmem:[%s220 + $0x28] sm:$0xff]
      %v234 = vld [vmem:[%s220 + $0x30] sm:$0xff]
      %v235 = vld [vmem:[%s220 + $0x38] sm:$0xff]
      %v236 = vld [vmem:[%s1] sm:$0xff]
      %v237 = vld [vmem:[%s1 + $0x8] sm:$0xff]
      %v238 = vld [vmem:[%s1 + $0x10] sm:$0xff]
      %v239 = vld [vmem:[%s1 + $0x18] sm:$0xff]
      %v240 = vld [vmem:[%s2] sm:$0x1]
      %v242 = vlaneseq
      %v243 = vshrl.u32 %v242, 7
      %v244 = vsub.s32 0, %v243
      %v245 = vrot.slane %v240, %v244
      %vm247 = vcmask 261120
      %v249 = vsel %vm247, %v228, 0
      %v252 = vsel %vm247, %v229, 0
      %v255 = vsel %vm247, %v230, 0
      %v258 = vsel %vm247, %v231, 0
      %v261 = vsel %vm247, %v232, 0
      %v264 = vsel %vm247, %v233, 0
      %v267 = vsel %vm247, %v234, 0
      %v270 = vsel %vm247, %v235, 0
      %272 = vmatprep.subr.mxu0 0.0
      %273 = vmatpush1.msra.mxu0 %v236
      %274 = vmatprep.subr.mxu0 0.0
      %275 = vmatpush1.msra.mxu0 %v237
      %276 = vmatprep.subr.mxu0 0.0
      %277 = vmatpush1.msra.mxu0 %v238
      %278 = vmatprep.subr.mxu0 0.0
      %279 = vmatpush1.msra.mxu0 %v239
      %280 = vmatprep.subr.mxu0 0.0
      %281 = vmatpush1.msra.mxu0 0.0
      %282 = vmatprep.subr.mxu0 0.0
      %283 = vmatpush1.msra.mxu0 0.0
      %284 = vmatprep.subr.mxu0 0.0
      %285 = vmatpush1.msra.mxu0 0.0
      %286 = vmatprep.subr.mxu0 0.0
      %287 = vmatpush1.msra.mxu0 0.0
      %288 = vmatprep.subr.mxu0 0.0
      %289 = vmatpush1.msra.mxu0 0.0
      %290 = vmatprep.subr.mxu0 0.0
      %291 = vmatpush1.msra.mxu0 0.0
      %292 = vmatprep.subr.mxu0 0.0
      %293 = vmatpush1.msra.mxu0 0.0
      %294 = vmatprep.subr.mxu0 0.0
      %295 = vmatpush1.msra.mxu0 0.0
      %296 = vmatprep.subr.mxu0 0.0
      %297 = vmatpush1.msra.mxu0 0.0
      %298 = vmatprep.subr.mxu0 0.0
      %299 = vmatpush1.msra.mxu0 0.0
      %300 = vmatprep.subr.mxu0 0.0
      %301 = vmatpush1.msra.mxu0 0.0
      %302 = vmatprep.subr.mxu0 0.0
      %303 = vmatpush1.msra.mxu0 0.0
      %304 = vmatprep.subr.mxu0 0.0
      %305 = vmatpush1.msra.mxu0 0.0
      %306 = vmatprep.subr.mxu0 0.0
      %307 = vmatpush1.msra.mxu0 0.0
      %308 = vmatprep.subr.mxu0 0.0
      %309 = vmatpush1.msra.mxu0 0.0
      %310 = vmatprep.subr.mxu0 0.0
      %311 = vmatpush1.msra.mxu0 0.0
      %312 = vmatprep.subr.mxu0 0.0
      %313 = vmatpush1.msra.mxu0 0.0
      %314 = vmatprep.subr.mxu0 0.0
      %315 = vmatpush1.msra.mxu0 0.0
      %316 = vmatprep.subr.mxu0 0.0
      %317 = vmatpush1.msra.mxu0 0.0
      %318 = vmatprep.subr.mxu0 0.0
      %319 = vmatpush1.msra.mxu0 0.0
      %320 = vmatprep.subr.mxu0 0.0
      %321 = vmatpush1.msra.mxu0 0.0
      %322 = vmatprep.subr.mxu0 0.0
      %323 = vmatpush1.msra.mxu0 0.0
      %324 = vmatprep.subr.mxu0 0.0
      %325 = vmatpush1.msra.mxu0 0.0
      %326 = vmatprep.subr.mxu0 0.0
      %327 = vmatpush1.msra.mxu0 0.0
      %328 = vmatprep.subr.mxu0 0.0
      %329 = vmatpush1.msra.mxu0 0.0
      %330 = vmatprep.subr.mxu0 0.0
      %331 = vmatpush1.msra.mxu0 0.0
      %332 = vmatprep.subr.mxu0 0.0
      %333 = vmatpush1.msra.mxu0 0.0
      %334 = vmatprep.subr.mxu0 0.0
      %335 = vmatpush1.msra.mxu0 0.0
      %336 = vmatprep.mubr.f32.mxu0 0.0
      %337 = vmatmul.mubr.f32.gmra.mrb[0].mxu0 %v249
      %v338 = vpop.f32.mrb[0].mxu0
      %v339 = vadd.f32 %v245, %v338
      %v340 = vpop.f32.mrb[0].mxu0
      %341 = vmatprep.mubr.f32.mxu0 0.0
      %342 = vmatmul.mubr.f32.gmra.mrb[0].mxu0 %v252
      %v343 = vpop.f32.mrb[0].mxu0
      %v344 = vadd.f32 %v245, %v343
      %v345 = vpop.f32.mrb[0].mxu0
      %346 = vmatprep.mubr.f32.mxu0 0.0
      %347 = vmatmul.mubr.f32.gmra.mrb[0].mxu0 %v255
      %v348 = vpop.f32.mrb[0].mxu0
      %v349 = vadd.f32 %v245, %v348
      %v350 = vpop.f32.mrb[0].mxu0
      %351 = vmatprep.mubr.f32.mxu0 0.0
      %352 = vmatmul.mubr.f32.gmra.mrb[0].mxu0 %v258
      %v353 = vpop.f32.mrb[0].mxu0
      %v354 = vadd.f32 %v245, %v353
      %v355 = vpop.f32.mrb[0].mxu0
      %356 = vmatprep.mubr.f32.mxu0 0.0
      %357 = vmatmul.mubr.f32.gmra.mrb[0].mxu0 %v261
      %v358 = vpop.f32.mrb[0].mxu0
      %v359 = vadd.f32 %v245, %v358
      %v360 = vpop.f32.mrb[0].mxu0
      %361 = vmatprep.mubr.f32.mxu0 0.0
      %362 = vmatmul.mubr.f32.gmra.mrb[0].mxu0 %v264
      %v363 = vpop.f32.mrb[0].mxu0
      %v364 = vadd.f32 %v245, %v363
      %v365 = vpop.f32.mrb[0].mxu0
      %366 = vmatprep.mubr.f32.mxu0 0.0
      %367 = vmatmul.mubr.f32.gmra.mrb[0].mxu0 %v267
      %v368 = vpop.f32.mrb[0].mxu0
      %v369 = vadd.f32 %v245, %v368
      %v370 = vpop.f32.mrb[0].mxu0
      %371 = vmatprep.mubr.f32.mxu0 0.0
      %372 = vmatmul.mubr.f32.gmra.mrb[0].mxu0 %v270
      %v373 = vpop.f32.mrb[0].mxu0
      %v374 = vadd.f32 %v245, %v373
      %v375 = vpop.f32.mrb[0].mxu0
      %376 = vdwg.mxu0
      %v377 = vmul.f32 %v339, 0.5
      %v378 = vmul.f32 %v344, 0.5
      %v379 = vmul.f32 %v349, 0.5
      %v380 = vmul.f32 %v354, 0.5
      %v381 = vmul.f32 %v359, 0.5
      %v382 = vmul.f32 %v364, 0.5
      %v383 = vmul.f32 %v369, 0.5
      %v384 = vmul.f32 %v374, 0.5
      %v385 = vmul.f32 %v339, 0.70710677
      %v386 = vmul.f32 %v344, 0.70710677
      %v387 = vmul.f32 %v349, 0.70710677
      %v388 = vmul.f32 %v354, 0.70710677
      %v389 = vmul.f32 %v359, 0.70710677
      %v390 = vmul.f32 %v364, 0.70710677
      %v391 = vmul.f32 %v369, 0.70710677
      %v392 = vmul.f32 %v374, 0.70710677
      %v393 = verf.f32.pop %v385
      %v394 = verf.f32.pop %v386
      %v395 = verf.f32.pop %v387
      %v396 = verf.f32.pop %v388
      %v397 = verf.f32.pop %v389
      %v398 = verf.f32.pop %v390
      %v399 = verf.f32.pop %v391
      %v400 = verf.f32.pop %v392
      %v401 = vadd.f32 %v393, 1.0
      %v402 = vadd.f32 %v394, 1.0
      %v403 = vadd.f32 %v395, 1.0
      %v404 = vadd.f32 %v396, 1.0
      %v405 = vadd.f32 %v397, 1.0
      %v406 = vadd.f32 %v398, 1.0
      %v407 = vadd.f32 %v399, 1.0
      %v408 = vadd.f32 %v400, 1.0
      %v409 = vmul.f32 %v377, %v401
      %v410 = vmul.f32 %v378, %v402
      %v411 = vmul.f32 %v379, %v403
      %v412 = vmul.f32 %v380, %v404
      %v413 = vmul.f32 %v381, %v405
      %v414 = vmul.f32 %v382, %v406
      %v415 = vmul.f32 %v383, %v407
      %v416 = vmul.f32 %v384, %v408
      %v417 = vld [vmem:[%s3] sm:$0xff]
      %v418 = vld [vmem:[%s3 + $0x8] sm:$0xff]
      %v419 = vld [vmem:[%s3 + $0x10] sm:$0xff]
      %v420 = vld [vmem:[%s3 + $0x18] sm:$0xff]
      %v421 = vld [vmem:[%s3 + $0x20] sm:$0xff]
      %v422 = vld [vmem:[%s3 + $0x28] sm:$0xff]
      %v423 = vld [vmem:[%s3 + $0x30] sm:$0xff]
      %v424 = vld [vmem:[%s3 + $0x38] sm:$0xff]
      %v425 = vld [vmem:[%s4] sm:$0x1]
      %v427 = vlaneseq
      %v428 = vshrl.u32 %v427, 7
      %v429 = vsub.s32 0, %v428
      %v430 = vrot.slane %v425, %v429
      %vm432 = vcmask 523264
      %v434 = vsel %vm432, %v409, 0
      %v437 = vsel %vm432, %v410, 0
      %v440 = vsel %vm432, %v411, 0
      %v443 = vsel %vm432, %v412, 0
      %v446 = vsel %vm432, %v413, 0
      %v449 = vsel %vm432, %v414, 0
      %v452 = vsel %vm432, %v415, 0
      %v455 = vsel %vm432, %v416, 0
      %457 = vmatprep.subr.mxu0 0.0
      %458 = vmatpush1.msra.mxu0 %v417
      %459 = vmatprep.subr.mxu0 0.0
      %460 = vmatpush1.msra.mxu0 %v418
      %461 = vmatprep.subr.mxu0 0.0
      %462 = vmatpush1.msra.mxu0 %v419
      %463 = vmatprep.subr.mxu0 0.0
      %464 = vmatpush1.msra.mxu0 %v420
      %465 = vmatprep.subr.mxu0 0.0
      %466 = vmatpush1.msra.mxu0 %v421
      %467 = vmatprep.subr.mxu0 0.0
      %468 = vmatpush1.msra.mxu0 %v422
      %469 = vmatprep.subr.mxu0 0.0
      %470 = vmatpush1.msra.mxu0 %v423
      %471 = vmatprep.subr.mxu0 0.0
      %472 = vmatpush1.msra.mxu0 %v424
      %473 = vmatprep.subr.mxu0 0.0
      %474 = vmatpush1.msra.mxu0 0.0
      %475 = vmatprep.subr.mxu0 0.0
      %476 = vmatpush1.msra.mxu0 0.0
      %477 = vmatprep.subr.mxu0 0.0
      %478 = vmatpush1.msra.mxu0 0.0
      %479 = vmatprep.subr.mxu0 0.0
      %480 = vmatpush1.msra.mxu0 0.0
      %481 = vmatprep.subr.mxu0 0.0
      %482 = vmatpush1.msra.mxu0 0.0
      %483 = vmatprep.subr.mxu0 0.0
      %484 = vmatpush1.msra.mxu0 0.0
      %485 = vmatprep.subr.mxu0 0.0
      %486 = vmatpush1.msra.mxu0 0.0
      %487 = vmatprep.subr.mxu0 0.0
      %488 = vmatpush1.msra.mxu0 0.0
      %489 = vmatprep.subr.mxu0 0.0
      %490 = vmatpush1.msra.mxu0 0.0
      %491 = vmatprep.subr.mxu0 0.0
      %492 = vmatpush1.msra.mxu0 0.0
      %493 = vmatprep.subr.mxu0 0.0
      %494 = vmatpush1.msra.mxu0 0.0
      %495 = vmatprep.subr.mxu0 0.0
      %496 = vmatpush1.msra.mxu0 0.0
      %497 = vmatprep.subr.mxu0 0.0
      %498 = vmatpush1.msra.mxu0 0.0
      %499 = vmatprep.subr.mxu0 0.0
      %500 = vmatpush1.msra.mxu0 0.0
      %501 = vmatprep.subr.mxu0 0.0
      %502 = vmatpush1.msra.mxu0 0.0
      %503 = vmatprep.subr.mxu0 0.0
      %504 = vmatpush1.msra.mxu0 0.0
      %505 = vmatprep.subr.mxu0 0.0
      %506 = vmatpush1.msra.mxu0 0.0
      %507 = vmatprep.subr.mxu0 0.0
      %508 = vmatpush1.msra.mxu0 0.0
      %509 = vmatprep.subr.mxu0 0.0
      %510 = vmatpush1.msra.mxu0 0.0
      %511 = vmatprep.subr.mxu0 0.0
      %512 = vmatpush1.msra.mxu0 0.0
      %513 = vmatprep.subr.mxu0 0.0
      %514 = vmatpush1.msra.mxu0 0.0
      %515 = vmatprep.subr.mxu0 0.0
      %516 = vmatpush1.msra.mxu0 0.0
      %517 = vmatprep.subr.mxu0 0.0
      %518 = vmatpush1.msra.mxu0 0.0
      %519 = vmatprep.subr.mxu0 0.0
      %520 = vmatpush1.msra.mxu0 0.0
      %521 = vmatprep.mubr.f32.mxu0 0.0
      %522 = vmatmul.mubr.f32.gmra.mrb[0].mxu0 %v434
      %v523 = vpop.f32.mrb[0].mxu0
      %v524 = vadd.f32 %v430, %v523
      %v525 = vpop.f32.mrb[0].mxu0
      %526 = vmatprep.mubr.f32.mxu0 0.0
      %527 = vmatmul.mubr.f32.gmra.mrb[0].mxu0 %v437
      %v528 = vpop.f32.mrb[0].mxu0
      %v529 = vadd.f32 %v430, %v528
      %v530 = vpop.f32.mrb[0].mxu0
      %531 = vmatprep.mubr.f32.mxu0 0.0
      %532 = vmatmul.mubr.f32.gmra.mrb[0].mxu0 %v440
      %v533 = vpop.f32.mrb[0].mxu0
      %v534 = vadd.f32 %v430, %v533
      %v535 = vpop.f32.mrb[0].mxu0
      %536 = vmatprep.mubr.f32.mxu0 0.0
      %537 = vmatmul.mubr.f32.gmra.mrb[0].mxu0 %v443
      %v538 = vpop.f32.mrb[0].mxu0
      %v539 = vadd.f32 %v430, %v538
      %v540 = vpop.f32.mrb[0].mxu0
      %541 = vmatprep.mubr.f32.mxu0 0.0
      %542 = vmatmul.mubr.f32.gmra.mrb[0].mxu0 %v446
      %v543 = vpop.f32.mrb[0].mxu0
      %v544 = vadd.f32 %v430, %v543
      %v545 = vpop.f32.mrb[0].mxu0
      %546 = vmatprep.mubr.f32.mxu0 0.0
      %547 = vmatmul.mubr.f32.gmra.mrb[0].mxu0 %v449
      %v548 = vpop.f32.mrb[0].mxu0
      %v549 = vadd.f32 %v430, %v548
      %v550 = vpop.f32.mrb[0].mxu0
      %551 = vmatprep.mubr.f32.mxu0 0.0
      %552 = vmatmul.mubr.f32.gmra.mrb[0].mxu0 %v452
      %v553 = vpop.f32.mrb[0].mxu0
      %v554 = vadd.f32 %v430, %v553
      %v555 = vpop.f32.mrb[0].mxu0
      %556 = vmatprep.mubr.f32.mxu0 0.0
      %557 = vmatmul.mubr.f32.gmra.mrb[0].mxu0 %v455
      %v558 = vpop.f32.mrb[0].mxu0
      %v559 = vadd.f32 %v430, %v558
      %v560 = vpop.f32.mrb[0].mxu0
      %561 = vdwg.mxu0
      %562 = vst.msk [vmem:[%s226] sm:$0xff] %vm247, %v524
      %563 = vst.msk [vmem:[%s226 + $0x8] sm:$0xff] %vm247, %v529
      %564 = vst.msk [vmem:[%s226 + $0x10] sm:$0xff] %vm247, %v534
      %565 = vst.msk [vmem:[%s226 + $0x18] sm:$0xff] %vm247, %v539
      %566 = vst.msk [vmem:[%s226 + $0x20] sm:$0xff] %vm247, %v544
      %567 = vst.msk [vmem:[%s226 + $0x28] sm:$0xff] %vm247, %v549
      %568 = vst.msk [vmem:[%s226 + $0x30] sm:$0xff] %vm247, %v554
      %569 = vst.msk [vmem:[%s226 + $0x38] sm:$0xff] %vm247, %v559
      %s570 = smul.u32 8, %s16
      %p571 = scmp.lt.s32.totalorder %s570, 15
      %s572 = scalar_select %p571, %s570, 15
      %s573 = smul.addr %s572, 8
      %s574 = scalar_lea.vmem %s5, %s573
      // Predicated region
      $region41: #{_mlp_pallas_impl.1} parent=39 // pred_check
        %p575 = pneg %p144
      $region42: #{_mlp_pallas_impl.1} parent=39 // pred_check_branch
        %577 = sbr.rel (%p575) target = $region44
      $region43: #{_mlp_pallas_impl.1} parent=39 // pred_region
        %s578 = smul.u32 8, %s16
      $region44: #{_mlp_pallas_impl.1} parent=39 // pred_fallthru
        _
    $region40: #{_mlp_pallas_impl.1} parent=5 // pred_fallthru
      _
    %p579 = scmp.le.s32.totalorder 2, %s11
    // Predicated region
    $region45: #{_mlp_pallas_impl.1} parent=5 // pred_check
      %p580 = pneg %p579
    $region46: #{_mlp_pallas_impl.1} parent=5 // pred_check_branch
      %582 = sbr.rel (%p580) target = $region48
    $region47: #{_mlp_pallas_impl.1} parent=5 // pred_region
      %s583 = ssub.s32 %s11, 2
      // Predicated region
      $region49: #{_mlp_pallas_impl.1} parent=47 // pred_check
        %p584 = pneg %p150
      $region50: #{_mlp_pallas_impl.1} parent=47 // pred_check_branch
        %586 = sbr.rel (%p584) target = $region52
      $region51: #{_mlp_pallas_impl.1} parent=47 // pred_region
        %s587 = smul.u32 8, %s17
        %p588 = scmp.lt.s32.totalorder %s587, 15
        %s589 = scalar_select %p588, %s587, 15
        %s590 = smul.addr %s589, 8
        %s591 = scalar_lea.vmem %s5, %s590
      $region52: #{_mlp_pallas_impl.1} parent=47 // pred_fallthru
        _
    $region48: #{_mlp_pallas_impl.1} parent=5 // pred_fallthru
      _
  $region6: #{_mlp_pallas_impl.1} parent=0 // loop_footer
    %s15 = sadd.s32 1, %s11
  $region7: #{_mlp_pallas_impl.1} parent=0 // loop_footer_branch
    %10 = sbr.rel target = $region3
  $region8: #{_mlp_pallas_impl.1} parent=0 // loop_exit
    _

</llo_original>
